<compile_context>
chip_gen: v7x
topology: tpu7x:2x2x1
jax: 0.10.0
libtpu: 0.0.40
codegen_flags: <defaults>
</compile_context>

<pallas_src>
import jax
import jax.numpy as jnp
from jax.experimental import pallas as pl
from jax.experimental.pallas import tpu as pltpu

# ----------------------------- configuration -------------------------------
INSIZE = 16      # insize
OUTSIZE = 8      # outsize
H = 2            # number of extra hidden layers
DH = 128         # hidden width
OUT_PAD = 128    # lane-dense padded output width


# ------------------------------- kernel ------------------------------------
def mlp_kernel(x_ref, w0_ref, b0_ref, w1_ref, b1_ref,
               w2_ref, b2_ref, w3_ref, b3_ref, o_ref):
    # Layer 0: Linear(insize, dh) + ReLU  (bf16 MXU inputs, f32 accumulation)
    h = jnp.dot(x_ref[...], w0_ref[...],
                preferred_element_type=jnp.float32) + b0_ref[...]
    h = jnp.maximum(h, 0.0)
    # Hidden layer 1: Linear(dh, dh) + ReLU
    h = jnp.dot(h.astype(jnp.bfloat16), w1_ref[...],
                preferred_element_type=jnp.float32) + b1_ref[...]
    h = jnp.maximum(h, 0.0)
    # Hidden layer 2: Linear(dh, dh) + ReLU
    h = jnp.dot(h.astype(jnp.bfloat16), w2_ref[...],
                preferred_element_type=jnp.float32) + b2_ref[...]
    h = jnp.maximum(h, 0.0)
    # Final layer: Linear(dh, outsize_padded), no activation. Lane-dense store.
    o_ref[...] = (jnp.dot(h.astype(jnp.bfloat16), w3_ref[...],
                          preferred_element_type=jnp.float32)
                  + b3_ref[...]).astype(o_ref.dtype)


# ------------------------------- wrapper ------------------------------------
def network_forward(x, params, *, block_m=256):
    """Forward pass of Network.forward (the MLP).

    x: (batch, INSIZE) float32
    params: list of (W_t, b) with W_t shaped (in, out) [i.e. PyTorch W.T],
            b shaped (out,), all float32.
    """
    batch, insize = x.shape
    dh = params[0][0].shape[1]
    outsize = params[-1][0].shape[1]

    # Choose batch tile: big enough to fill the MXU / amortize per-step
    # overhead, but never larger than (8-rounded) batch at tiny sizes.
    tm = min(block_m, ((batch + 7) // 8) * 8)
    tm = max(tm, 8)
    padded_batch = ((batch + tm - 1) // tm) * tm

    # Pad batch rows with zeros (sliced away after the call).
    x_p = x
    if padded_batch != batch:
        x_p = jnp.pad(x, ((0, padded_batch - batch), (0, 0)))
    x_bf16 = x_p.astype(jnp.bfloat16)

    # Pack params: weights -> bf16 (MXU native), biases stay f32 (1, out).
    (w0, b0), (w1, b1), (w2, b2), (w3, b3) = params
    w0 = w0.astype(jnp.bfloat16)
    w1 = w1.astype(jnp.bfloat16)
    w2 = w2.astype(jnp.bfloat16)
    # Pad final layer to OUT_PAD lanes so the output store is lane-dense.
    w3p = jnp.zeros((dh, OUT_PAD), jnp.float32).at[:, :outsize].set(w3)
    w3p = w3p.astype(jnp.bfloat16)
    b3p = jnp.zeros((1, OUT_PAD), jnp.float32).at[:, :outsize].set(b3)
    b0 = b0.reshape(1, -1).astype(jnp.float32)
    b1 = b1.reshape(1, -1).astype(jnp.float32)
    b2 = b2.reshape(1, -1).astype(jnp.float32)

    grid = (padded_batch // tm,)

    flops = 2 * padded_batch * (insize * dh + H * dh * dh + dh * OUT_PAD)
    bytes_accessed = (x_bf16.size * 2
                      + (w0.size + w1.size + w2.size + w3p.size) * 2
                      + (b0.size + b1.size + b2.size + b3p.size) * 4
                      + padded_batch * OUT_PAD * 4)

    out_padded = pl.pallas_call(
        mlp_kernel,
        out_shape=jax.ShapeDtypeStruct((padded_batch, OUT_PAD), jnp.float32),
        grid=grid,
        in_specs=[
            pl.BlockSpec((tm, insize), lambda i: (i, 0)),       # x tile
            pl.BlockSpec((insize, dh), lambda i: (0, 0)),       # w0 (resident)
            pl.BlockSpec((1, dh), lambda i: (0, 0)),            # b0
            pl.BlockSpec((dh, dh), lambda i: (0, 0)),           # w1
            pl.BlockSpec((1, dh), lambda i: (0, 0)),            # b1
            pl.BlockSpec((dh, dh), lambda i: (0, 0)),           # w2
            pl.BlockSpec((1, dh), lambda i: (0, 0)),            # b2
            pl.BlockSpec((dh, OUT_PAD), lambda i: (0, 0)),      # w3 (padded)
            pl.BlockSpec((1, OUT_PAD), lambda i: (0, 0)),       # b3 (padded)
        ],
        out_specs=pl.BlockSpec((tm, OUT_PAD), lambda i: (i, 0)),
        compiler_params=pltpu.CompilerParams(
            dimension_semantics=("parallel",)),
        cost_estimate=pl.CostEstimate(
            flops=flops, bytes_accessed=bytes_accessed, transcendentals=0),
    )(x_bf16, w0, b0, w1, b1, w2, b2, w3p, b3p)

    return out_padded[:batch, :outsize]


# --------------------------- parameter init --------------------------------
def init_params(key):
    """Deterministic synthetic init matching the nn.Linear shapes of the module."""
    dims = [(INSIZE, DH)] + [(DH, DH)] * H + [(DH, OUTSIZE)]
    params = []
    for (din, dout) in dims:
        key, kw, kb = jax.random.split(key, 3)
        scale = 1.0 / jnp.sqrt(jnp.float32(din))
        # stored directly as (in, out) == W.T of the PyTorch (out, in) weight
        w_t = jax.random.uniform(kw, (din, dout), jnp.float32,
                                 minval=-scale, maxval=scale)
        b = jax.random.uniform(kb, (dout,), jnp.float32,
                               minval=-scale, maxval=scale)
        params.append((w_t, b))
    return params


def reference_forward(x, params):
    """Pure-JAX reference matching the kernel's bf16-input / f32-acc numerics."""
    h = x.astype(jnp.bfloat16).astype(jnp.float32)
    n = len(params)
    for i, (w, b) in enumerate(params):
        w_bf = w.astype(jnp.bfloat16).astype(jnp.float32)
        h = h @ w_bf + b
        if i < n - 1:
            h = jnp.maximum(h, 0.0)
            h = h.astype(jnp.bfloat16).astype(jnp.float32)
    return h


# TODO(synk): sample()/log_p() use torch.distributions (random sampling /
# log-prob of a Normal); only forward() is implemented as a kernel here.

if __name__ == "__main__":
    key = jax.random.PRNGKey(0)
    key, kx = jax.random.split(key)

    BATCH = 200  # small, deliberately not a multiple of the tile to test padding
    x = jax.random.normal(kx, (BATCH, INSIZE), dtype=jnp.float32)
    params = init_params(key)

    # block_m=64 -> multi-step batch grid even at this small test size.
    out = network_forward(x, params, block_m=64)
    out = jax.block_until_ready(out)

    ref = reference_forward(x, params)
    assert out.shape == (BATCH, OUTSIZE), out.shape
    assert jnp.allclose(out, ref, atol=5e-3, rtol=5e-3), "mismatch vs reference"

    print("KERNEL_OK")
</pallas_src>

<mosaic_0001>
module attributes {stable_mosaic.version = 11 : i64} {
  func.func @mlp_kernel(%arg0: i32, %arg1: memref<64x16xbf16, #tpu.memory_space<vmem>>, %arg2: memref<16x128xbf16, #tpu.memory_space<vmem>>, %arg3: memref<1x128xf32, #tpu.memory_space<vmem>>, %arg4: memref<128x128xbf16, #tpu.memory_space<vmem>>, %arg5: memref<1x128xf32, #tpu.memory_space<vmem>>, %arg6: memref<128x128xbf16, #tpu.memory_space<vmem>>, %arg7: memref<1x128xf32, #tpu.memory_space<vmem>>, %arg8: memref<128x128xbf16, #tpu.memory_space<vmem>>, %arg9: memref<1x128xf32, #tpu.memory_space<vmem>>, %arg10: memref<64x128xf32, #tpu.memory_space<vmem>>) attributes {dimension_semantics = [#tpu.dimension_semantics<parallel>], iteration_bounds = array<i64: 4>, scalar_prefetch = 0 : i64, scratch_operands = 0 : i64, tpu.core_type = #tpu.core_type<tc>, window_params = [{transform_indices = @transform_0, window_bounds = array<i64: 64, 16>}, {pipeline_mode = #tpu.pipeline_mode<synchronous>, transform_indices = @transform_1, window_bounds = array<i64: 16, 128>}, {pipeline_mode = #tpu.pipeline_mode<synchronous>, transform_indices = @transform_2, window_bounds = array<i64: 1, 128>}, {pipeline_mode = #tpu.pipeline_mode<synchronous>, transform_indices = @transform_3, window_bounds = array<i64: 128, 128>}, {pipeline_mode = #tpu.pipeline_mode<synchronous>, transform_indices = @transform_4, window_bounds = array<i64: 1, 128>}, {pipeline_mode = #tpu.pipeline_mode<synchronous>, transform_indices = @transform_5, window_bounds = array<i64: 128, 128>}, {pipeline_mode = #tpu.pipeline_mode<synchronous>, transform_indices = @transform_6, window_bounds = array<i64: 1, 128>}, {pipeline_mode = #tpu.pipeline_mode<synchronous>, transform_indices = @transform_7, window_bounds = array<i64: 128, 128>}, {pipeline_mode = #tpu.pipeline_mode<synchronous>, transform_indices = @transform_8, window_bounds = array<i64: 1, 128>}, {transform_indices = @transform_9, window_bounds = array<i64: 64, 128>}]} {
    %c0 = arith.constant 0 : index
    %c0_0 = arith.constant 0 : index
    %0 = vector.load %arg1[%c0, %c0_0] : memref<64x16xbf16, #tpu.memory_space<vmem>>, vector<64x16xbf16>
    %c0_1 = arith.constant 0 : index
    %c0_2 = arith.constant 0 : index
    %1 = vector.load %arg2[%c0_1, %c0_2] : memref<16x128xbf16, #tpu.memory_space<vmem>>, vector<16x128xbf16>
    %cst = arith.constant dense<0.000000e+00> : vector<64x128xf32>
    %2 = tpu.matmul %0, %1, %cst {dimension_numbers = #tpu.dot_dimension_numbers<[1], [0], [0], [1], [0, 0, 1, 1], [], []>} : vector<64x16xbf16>, vector<16x128xbf16>, vector<64x128xf32> -> vector<64x128xf32>
    %c0_3 = arith.constant 0 : index
    %c0_4 = arith.constant 0 : index
    %3 = vector.load %arg3[%c0_3, %c0_4] : memref<1x128xf32, #tpu.memory_space<vmem>>, vector<1x128xf32>
    %4 = vector.broadcast %3 : vector<1x128xf32> to vector<64x128xf32>
    %5 = arith.addf %2, %4 : vector<64x128xf32>
    %cst_5 = arith.constant 0.000000e+00 : f32
    %6 = vector.broadcast %cst_5 : f32 to vector<64x128xf32>
    %7 = arith.maximumf %5, %6 : vector<64x128xf32>
    %8 = arith.truncf %7 : vector<64x128xf32> to vector<64x128xbf16>
    %c0_6 = arith.constant 0 : index
    %c0_7 = arith.constant 0 : index
    %9 = vector.load %arg4[%c0_6, %c0_7] : memref<128x128xbf16, #tpu.memory_space<vmem>>, vector<128x128xbf16>
    %cst_8 = arith.constant dense<0.000000e+00> : vector<64x128xf32>
    %10 = tpu.matmul %8, %9, %cst_8 {dimension_numbers = #tpu.dot_dimension_numbers<[1], [0], [0], [1], [0, 0, 1, 1], [], []>} : vector<64x128xbf16>, vector<128x128xbf16>, vector<64x128xf32> -> vector<64x128xf32>
    %c0_9 = arith.constant 0 : index
    %c0_10 = arith.constant 0 : index
    %11 = vector.load %arg5[%c0_9, %c0_10] : memref<1x128xf32, #tpu.memory_space<vmem>>, vector<1x128xf32>
    %12 = vector.broadcast %11 : vector<1x128xf32> to vector<64x128xf32>
    %13 = arith.addf %10, %12 : vector<64x128xf32>
    %cst_11 = arith.constant 0.000000e+00 : f32
    %14 = vector.broadcast %cst_11 : f32 to vector<64x128xf32>
    %15 = arith.maximumf %13, %14 : vector<64x128xf32>
    %16 = arith.truncf %15 : vector<64x128xf32> to vector<64x128xbf16>
    %c0_12 = arith.constant 0 : index
    %c0_13 = arith.constant 0 : index
    %17 = vector.load %arg6[%c0_12, %c0_13] : memref<128x128xbf16, #tpu.memory_space<vmem>>, vector<128x128xbf16>
    %cst_14 = arith.constant dense<0.000000e+00> : vector<64x128xf32>
    %18 = tpu.matmul %16, %17, %cst_14 {dimension_numbers = #tpu.dot_dimension_numbers<[1], [0], [0], [1], [0, 0, 1, 1], [], []>} : vector<64x128xbf16>, vector<128x128xbf16>, vector<64x128xf32> -> vector<64x128xf32>
    %c0_15 = arith.constant 0 : index
    %c0_16 = arith.constant 0 : index
    %19 = vector.load %arg7[%c0_15, %c0_16] : memref<1x128xf32, #tpu.memory_space<vmem>>, vector<1x128xf32>
    %20 = vector.broadcast %19 : vector<1x128xf32> to vector<64x128xf32>
    %21 = arith.addf %18, %20 : vector<64x128xf32>
    %cst_17 = arith.constant 0.000000e+00 : f32
    %22 = vector.broadcast %cst_17 : f32 to vector<64x128xf32>
    %23 = arith.maximumf %21, %22 : vector<64x128xf32>
    %24 = arith.truncf %23 : vector<64x128xf32> to vector<64x128xbf16>
    %c0_18 = arith.constant 0 : index
    %c0_19 = arith.constant 0 : index
    %25 = vector.load %arg8[%c0_18, %c0_19] : memref<128x128xbf16, #tpu.memory_space<vmem>>, vector<128x128xbf16>
    %cst_20 = arith.constant dense<0.000000e+00> : vector<64x128xf32>
    %26 = tpu.matmul %24, %25, %cst_20 {dimension_numbers = #tpu.dot_dimension_numbers<[1], [0], [0], [1], [0, 0, 1, 1], [], []>} : vector<64x128xbf16>, vector<128x128xbf16>, vector<64x128xf32> -> vector<64x128xf32>
    %c0_21 = arith.constant 0 : index
    %c0_22 = arith.constant 0 : index
    %27 = vector.load %arg9[%c0_21, %c0_22] : memref<1x128xf32, #tpu.memory_space<vmem>>, vector<1x128xf32>
    %28 = vector.broadcast %27 : vector<1x128xf32> to vector<64x128xf32>
    %29 = arith.addf %26, %28 : vector<64x128xf32>
    %c0_23 = arith.constant 0 : index
    %c0_24 = arith.constant 0 : index
    %30 = vector.load %arg10[%c0_23, %c0_24] : memref<64x128xf32, #tpu.memory_space<vmem>>, vector<64x128xf32>
    tpu.vector_store %arg10[%c0_23, %c0_24], %29 {strides = array<i32>} : memref<64x128xf32, #tpu.memory_space<vmem>>, vector<64x128xf32>,
    return
  }
  func.func @transform_0(%arg0: i32) -> (i32, i32) {
    %c0_i32 = arith.constant 0 : i32
    %c0_i32_0 = arith.constant 0 : i32
    return %arg0, %c0_i32 : i32, i32
  }
  func.func @transform_1(%arg0: i32) -> (i32, i32) {
    %c0_i32 = arith.constant 0 : i32
    %c0_i32_0 = arith.constant 0 : i32
    %c0_i32_1 = arith.constant 0 : i32
    return %c0_i32, %c0_i32_0 : i32, i32
  }
  func.func @transform_2(%arg0: i32) -> (i32, i32) {
    %c0_i32 = arith.constant 0 : i32
    %c0_i32_0 = arith.constant 0 : i32
    %c0_i32_1 = arith.constant 0 : i32
    return %c0_i32, %c0_i32_0 : i32, i32
  }
  func.func @transform_3(%arg0: i32) -> (i32, i32) {
    %c0_i32 = arith.constant 0 : i32
    %c0_i32_0 = arith.constant 0 : i32
    %c0_i32_1 = arith.constant 0 : i32
    return %c0_i32, %c0_i32_0 : i32, i32
  }
  func.func @transform_4(%arg0: i32) -> (i32, i32) {
    %c0_i32 = arith.constant 0 : i32
    %c0_i32_0 = arith.constant 0 : i32
    %c0_i32_1 = arith.constant 0 : i32
    return %c0_i32, %c0_i32_0 : i32, i32
  }
  func.func @transform_5(%arg0: i32) -> (i32, i32) {
    %c0_i32 = arith.constant 0 : i32
    %c0_i32_0 = arith.constant 0 : i32
    %c0_i32_1 = arith.constant 0 : i32
    return %c0_i32, %c0_i32_0 : i32, i32
  }
  func.func @transform_6(%arg0: i32) -> (i32, i32) {
    %c0_i32 = arith.constant 0 : i32
    %c0_i32_0 = arith.constant 0 : i32
    %c0_i32_1 = arith.constant 0 : i32
    return %c0_i32, %c0_i32_0 : i32, i32
  }
  func.func @transform_7(%arg0: i32) -> (i32, i32) {
    %c0_i32 = arith.constant 0 : i32
    %c0_i32_0 = arith.constant 0 : i32
    %c0_i32_1 = arith.constant 0 : i32
    return %c0_i32, %c0_i32_0 : i32, i32
  }
  func.func @transform_8(%arg0: i32) -> (i32, i32) {
    %c0_i32 = arith.constant 0 : i32
    %c0_i32_0 = arith.constant 0 : i32
    %c0_i32_1 = arith.constant 0 : i32
    return %c0_i32, %c0_i32_0 : i32, i32
  }
  func.func @transform_9(%arg0: i32) -> (i32, i32) {
    %c0_i32 = arith.constant 0 : i32
    %c0_i32_0 = arith.constant 0 : i32
    return %arg0, %c0_i32 : i32, i32
  }
}

</mosaic_0001>

<llo_original>
// kernel: tpu_custom_call.1
$region0: #{tpu_custom_call.1}
  #allocation0 [shape = 'u32[]', space=smem, size = 0x4, offset = 0x4, fixed_abs, tag = 'smem constant byte address 0x4 - core index']
  #allocation1 [shape = 'u32[144,128]{1,0:T(1,128)}', space=vmem, size = 0x12000, scoped, tag = 'internal scratch']
  %s0 = inlined_call_operand.vmem [shape: bf16[256,16], index: 0, kind: input, shape index: {}]
  %s1 = inlined_call_operand.vmem [shape: bf16[16,128], index: 1, kind: input, shape index: {}]
  %s2 = inlined_call_operand.vmem [shape: f32[1,128], index: 2, kind: input, shape index: {}]
  %s3 = inlined_call_operand.vmem [shape: bf16[128,128], index: 3, kind: input, shape index: {}]
  %s4 = inlined_call_operand.vmem [shape: f32[1,128], index: 4, kind: input, shape index: {}]
  %s5 = inlined_call_operand.vmem [shape: bf16[128,128], index: 5, kind: input, shape index: {}]
  %s6 = inlined_call_operand.vmem [shape: f32[1,128], index: 6, kind: input, shape index: {}]
  %s7 = inlined_call_operand.hbm [shape: bf16[128,128], index: 7, kind: input, shape index: {}]
  %s8 = inlined_call_operand.vmem [shape: f32[1,128], index: 8, kind: input, shape index: {}]
  %s9 = inlined_call_operand.hbm [shape: f32[256,128], index: 9, kind: output, shape index: {}]
  %s10 = sld [smem:[#allocation0]]
  $region73: #{tpu_custom_call.1} parent=0
    _
  %s12 = ssub.s32 1, %s10
  %s13 = scalar_select 0, %s12, %s10
  $region1: #{tpu_custom_call.1} parent=0
    #allocation2 [shape = 'u8[32768]{0}', space=vmem, size = 0x8000, scoped, tag = 'input window, operand 7, single buffered']
    #allocation3 [shape = 's32[2]{0}', space=sflag, size = 0x8, scoped, tag = 'scoped memory for tpu_custom_call.1']
    #allocation4 [shape = 's32[2]{0}', space=sflag, size = 0x8, scoped, tag = 'scoped memory for tpu_custom_call.1']
    #allocation5 [shape = 'u8[65536]{0}', space=vmem, size = 0x10000, scoped, tag = 'output window, operand 0']
    %14 = vsyncpa [#allocation3], 0
    %15 = vsyncpa [#allocation4], 0
    %s16 = scalar_lea.sflag [#allocation4], 1
    %17 = vsyncpa %s16, 0
    loop: start=0, step=1, limit=6
    $region2: #{tpu_custom_call.1} parent=1 // loop_pre_header
      _
    $region3: #{tpu_custom_call.1} parent=1 // loop_header
      %s19 = sphi 0, %s23
      %p20 = scmp.ge.s32.totalorder %s19, 6
      %s29 = sphi 0, %s31
      %s32 = sphi 0, %s29
      %s33 = sphi 0, %s32
      %s49 = sphi 0, %s33
      %s53 = sphi 0, %s53
      %s55 = sphi 0, %s53
      %s56 = sphi 0, %s55
      %s70 = sphi 0, %s56
      %s74 = sphi 0, %s74
      %s76 = sphi 0, %s74
      %s77 = sphi 0, %s76
      %s91 = sphi 0, %s77
      %s95 = sphi 0, %s95
      %s97 = sphi 0, %s95
      %s98 = sphi 0, %s97
      %s112 = sphi 0, %s98
      %s116 = sphi 0, %s116
      %s118 = sphi 0, %s116
      %s119 = sphi 0, %s118
      %s133 = sphi 0, %s119
      %s137 = sphi 0, %s137
      %s139 = sphi 0, %s137
      %s140 = sphi 0, %s139
      %s154 = sphi 0, %s140
      %s158 = sphi 0, %s158
      %s160 = sphi 0, %s158
      %s161 = sphi 0, %s160
      %s175 = sphi 0, %s161
      %s179 = sphi 0, %s179
      %s181 = sphi 0, %s179
      %s182 = sphi 0, %s181
      %s196 = sphi 0, %s182
      %s200 = sphi 0, %s200
      %s202 = sphi 0, %s200
      %s203 = sphi 0, %s202
      %s217 = sphi 0, %s203
      %s223 = sphi 0, %s225
      %s226 = sphi 0, %s223
      %s227 = sphi 0, %s226
      %s243 = sphi 0, %s227
    $region4: #{tpu_custom_call.1} parent=1 // loop_header_branch
      %22 = sbr.rel (%p20) target = $region8
    $region5: #{tpu_custom_call.1} parent=1 // loop_body
      %s24 = ssub.s32 %s19, 1
      %s25 = ssub.s32 %s19, 2
      %s26 = sadd.s32 %s19, 1
      %s27 = ssub.s32 %s19, %s26
      %p28 = scmp.eq.s32.totalorder %s27, 0
      %s30 = sadd.s32 %s29, 1
      %s31 = scalar_select %p28, %s29, %s30
      %p34 = pneg %p28
      %p35 = scmp.eq.s32.totalorder %s19, 3
      %p36 = por %p34, %p35
      %p37 = scmp.ne.s32.totalorder %s29, %s32
      %p38 = scmp.eq.s32.totalorder %s19, 0
      %p39 = por %p37, %p38
      %p40 = scmp.ne.s32.totalorder %s29, %s32
      %p41 = scmp.eq.s32.totalorder %s24, 3
      %p42 = por %p40, %p41
      %p43 = scmp.ne.s32.totalorder %s32, %s33
      %p44 = scmp.eq.s32.totalorder %s24, 0
      %p45 = por %p43, %p44
      %p46 = scmp.ne.s32.totalorder %s32, %s33
      %p47 = scmp.eq.s32.totalorder %s25, 3
      %p48 = por %p46, %p47
      %p50 = scmp.ne.s32.totalorder %s33, %s49
      %p51 = scmp.eq.s32.totalorder %s25, 0
      %p52 = por %p50, %p51
      %s54 = sadd.s32 %s53, 1
      %p57 = scmp.eq.s32.totalorder %s19, 3
      %p58 = scmp.ne.s32.totalorder %s53, %s55
      %p59 = scmp.eq.s32.totalorder %s19, 0
      %p60 = por %p58, %p59
      %p61 = scmp.ne.s32.totalorder %s53, %s55
      %p62 = scmp.eq.s32.totalorder %s24, 3
      %p63 = por %p61, %p62
      %p64 = scmp.ne.s32.totalorder %s55, %s56
      %p65 = scmp.eq.s32.totalorder %s24, 0
      %p66 = por %p64, %p65
      %p67 = scmp.ne.s32.totalorder %s55, %s56
      %p68 = scmp.eq.s32.totalorder %s25, 3
      %p69 = por %p67, %p68
      %p71 = scmp.ne.s32.totalorder %s56, %s70
      %p72 = scmp.eq.s32.totalorder %s25, 0
      %p73 = por %p71, %p72
      %s75 = sadd.s32 %s74, 1
      %p78 = scmp.eq.s32.totalorder %s19, 3
      %p79 = scmp.ne.s32.totalorder %s74, %s76
      %p80 = scmp.eq.s32.totalorder %s19, 0
      %p81 = por %p79, %p80
      %p82 = scmp.ne.s32.totalorder %s74, %s76
      %p83 = scmp.eq.s32.totalorder %s24, 3
      %p84 = por %p82, %p83
      %p85 = scmp.ne.s32.totalorder %s76, %s77
      %p86 = scmp.eq.s32.totalorder %s24, 0
      %p87 = por %p85, %p86
      %p88 = scmp.ne.s32.totalorder %s76, %s77
      %p89 = scmp.eq.s32.totalorder %s25, 3
      %p90 = por %p88, %p89
      %p92 = scmp.ne.s32.totalorder %s77, %s91
      %p93 = scmp.eq.s32.totalorder %s25, 0
      %p94 = por %p92, %p93
      %s96 = sadd.s32 %s95, 1
      %p99 = scmp.eq.s32.totalorder %s19, 3
      %p100 = scmp.ne.s32.totalorder %s95, %s97
      %p101 = scmp.eq.s32.totalorder %s19, 0
      %p102 = por %p100, %p101
      %p103 = scmp.ne.s32.totalorder %s95, %s97
      %p104 = scmp.eq.s32.totalorder %s24, 3
      %p105 = por %p103, %p104
      %p106 = scmp.ne.s32.totalorder %s97, %s98
      %p107 = scmp.eq.s32.totalorder %s24, 0
      %p108 = por %p106, %p107
      %p109 = scmp.ne.s32.totalorder %s97, %s98
      %p110 = scmp.eq.s32.totalorder %s25, 3
      %p111 = por %p109, %p110
      %p113 = scmp.ne.s32.totalorder %s98, %s112
      %p114 = scmp.eq.s32.totalorder %s25, 0
      %p115 = por %p113, %p114
      %s117 = sadd.s32 %s116, 1
      %p120 = scmp.eq.s32.totalorder %s19, 3
      %p121 = scmp.ne.s32.totalorder %s116, %s118
      %p122 = scmp.eq.s32.totalorder %s19, 0
      %p123 = por %p121, %p122
      %p124 = scmp.ne.s32.totalorder %s116, %s118
      %p125 = scmp.eq.s32.totalorder %s24, 3
      %p126 = por %p124, %p125
      %p127 = scmp.ne.s32.totalorder %s118, %s119
      %p128 = scmp.eq.s32.totalorder %s24, 0
      %p129 = por %p127, %p128
      %p130 = scmp.ne.s32.totalorder %s118, %s119
      %p131 = scmp.eq.s32.totalorder %s25, 3
      %p132 = por %p130, %p131
      %p134 = scmp.ne.s32.totalorder %s119, %s133
      %p135 = scmp.eq.s32.totalorder %s25, 0
      %p136 = por %p134, %p135
      %s138 = sadd.s32 %s137, 1
      %p141 = scmp.eq.s32.totalorder %s19, 3
      %p142 = scmp.ne.s32.totalorder %s137, %s139
      %p143 = scmp.eq.s32.totalorder %s19, 0
      %p144 = por %p142, %p143
      %p145 = scmp.ne.s32.totalorder %s137, %s139
      %p146 = scmp.eq.s32.totalorder %s24, 3
      %p147 = por %p145, %p146
      %p148 = scmp.ne.s32.totalorder %s139, %s140
      %p149 = scmp.eq.s32.totalorder %s24, 0
      %p150 = por %p148, %p149
      %p151 = scmp.ne.s32.totalorder %s139, %s140
      %p152 = scmp.eq.s32.totalorder %s25, 3
      %p153 = por %p151, %p152
      %p155 = scmp.ne.s32.totalorder %s140, %s154
      %p156 = scmp.eq.s32.totalorder %s25, 0
      %p157 = por %p155, %p156
      %s159 = sadd.s32 %s158, 1
      %p162 = scmp.eq.s32.totalorder %s19, 3
      %p163 = scmp.ne.s32.totalorder %s158, %s160
      %p164 = scmp.eq.s32.totalorder %s19, 0
      %p165 = por %p163, %p164
      %p166 = scmp.ne.s32.totalorder %s158, %s160
      %p167 = scmp.eq.s32.totalorder %s24, 3
      %p168 = por %p166, %p167
      %p169 = scmp.ne.s32.totalorder %s160, %s161
      %p170 = scmp.eq.s32.totalorder %s24, 0
      %p171 = por %p169, %p170
      %p172 = scmp.ne.s32.totalorder %s160, %s161
      %p173 = scmp.eq.s32.totalorder %s25, 3
      %p174 = por %p172, %p173
      %p176 = scmp.ne.s32.totalorder %s161, %s175
      %p177 = scmp.eq.s32.totalorder %s25, 0
      %p178 = por %p176, %p177
      %s180 = sadd.s32 %s179, 1
      %p183 = scmp.eq.s32.totalorder %s19, 3
      %p184 = scmp.ne.s32.totalorder %s179, %s181
      %p185 = scmp.eq.s32.totalorder %s19, 0
      %p186 = por %p184, %p185
      %p187 = scmp.ne.s32.totalorder %s179, %s181
      %p188 = scmp.eq.s32.totalorder %s24, 3
      %p189 = por %p187, %p188
      %p190 = scmp.ne.s32.totalorder %s181, %s182
      %p191 = scmp.eq.s32.totalorder %s24, 0
      %p192 = por %p190, %p191
      %p193 = scmp.ne.s32.totalorder %s181, %s182
      %p194 = scmp.eq.s32.totalorder %s25, 3
      %p195 = por %p193, %p194
      %p197 = scmp.ne.s32.totalorder %s182, %s196
      %p198 = scmp.eq.s32.totalorder %s25, 0
      %p199 = por %p197, %p198
      %s201 = sadd.s32 %s200, 1
      %p204 = scmp.eq.s32.totalorder %s19, 3
      %p205 = scmp.ne.s32.totalorder %s200, %s202
      %p206 = scmp.eq.s32.totalorder %s19, 0
      %p207 = por %p205, %p206
      %p208 = scmp.ne.s32.totalorder %s200, %s202
      %p209 = scmp.eq.s32.totalorder %s24, 3
      %p210 = por %p208, %p209
      %p211 = scmp.ne.s32.totalorder %s202, %s203
      %p212 = scmp.eq.s32.totalorder %s24, 0
      %p213 = por %p211, %p212
      %p214 = scmp.ne.s32.totalorder %s202, %s203
      %p215 = scmp.eq.s32.totalorder %s25, 3
      %p216 = por %p214, %p215
      %p218 = scmp.ne.s32.totalorder %s203, %s217
      %p219 = scmp.eq.s32.totalorder %s25, 0
      %p220 = por %p218, %p219
      %s221 = ssub.s32 %s19, %s26
      %p222 = scmp.eq.s32.totalorder %s221, 0
      %s224 = sadd.s32 %s223, 1
      %s225 = scalar_select %p222, %s223, %s224
      %p228 = pneg %p222
      %p229 = scmp.eq.s32.totalorder %s19, 3
      %p230 = por %p228, %p229
      %p231 = scmp.ne.s32.totalorder %s223, %s226
      %p232 = scmp.eq.s32.totalorder %s19, 0
      %p233 = por %p231, %p232
      %p234 = scmp.ne.s32.totalorder %s223, %s226
      %p235 = scmp.eq.s32.totalorder %s24, 3
      %p236 = por %p234, %p235
      %p237 = scmp.ne.s32.totalorder %s226, %s227
      %p238 = scmp.eq.s32.totalorder %s24, 0
      %p239 = por %p237, %p238
      %p240 = scmp.ne.s32.totalorder %s226, %s227
      %p241 = scmp.eq.s32.totalorder %s25, 3
      %p242 = por %p240, %p241
      %p244 = scmp.ne.s32.totalorder %s227, %s243
      %p245 = scmp.eq.s32.totalorder %s25, 0
      %p246 = por %p244, %p245
      %p247 = scmp.le.s32.totalorder 1, %s19
      %p248 = scmp.lt.s32.totalorder %s19, 5
      %p249 = pnand %p247, %p248
      %p250 = pneg %p249
      // Predicated region
      $region9: #{tpu_custom_call.1} parent=5 // pred_check
        _
      $region10: #{tpu_custom_call.1} parent=5 // pred_check_branch
        %252 = sbr.rel (%p249) target = $region12
      $region11: #{tpu_custom_call.1} parent=5 // pred_region
        %s253 = ssub.s32 %s19, 1
        // Predicated region
        $region13: #{tpu_custom_call.1} parent=11 // pred_check
          %p254 = pneg %p66
        $region14: #{tpu_custom_call.1} parent=11 // pred_check_branch
          %256 = sbr.rel (%p254) target = $region16
        $region15: #{tpu_custom_call.1} parent=11 // pred_region
          _
        $region16: #{tpu_custom_call.1} parent=11 // pred_fallthru
          _
        // Predicated region
        $region17: #{tpu_custom_call.1} parent=11 // pred_check
          %p257 = pneg %p87
        $region18: #{tpu_custom_call.1} parent=11 // pred_check_branch
          %259 = sbr.rel (%p257) target = $region20
        $region19: #{tpu_custom_call.1} parent=11 // pred_region
          _
        $region20: #{tpu_custom_call.1} parent=11 // pred_fallthru
          _
        // Predicated region
        $region21: #{tpu_custom_call.1} parent=11 // pred_check
          %p260 = pneg %p108
        $region22: #{tpu_custom_call.1} parent=11 // pred_check_branch
          %262 = sbr.rel (%p260) target = $region24
        $region23: #{tpu_custom_call.1} parent=11 // pred_region
          _
        $region24: #{tpu_custom_call.1} parent=11 // pred_fallthru
          _
        // Predicated region
        $region25: #{tpu_custom_call.1} parent=11 // pred_check
          %p263 = pneg %p129
        $region26: #{tpu_custom_call.1} parent=11 // pred_check_branch
          %265 = sbr.rel (%p263) target = $region28
        $region27: #{tpu_custom_call.1} parent=11 // pred_region
          _
        $region28: #{tpu_custom_call.1} parent=11 // pred_fallthru
          _
        // Predicated region
        $region29: #{tpu_custom_call.1} parent=11 // pred_check
          %p266 = pneg %p150
        $region30: #{tpu_custom_call.1} parent=11 // pred_check_branch
          %268 = sbr.rel (%p266) target = $region32
        $region31: #{tpu_custom_call.1} parent=11 // pred_region
          _
        $region32: #{tpu_custom_call.1} parent=11 // pred_fallthru
          _
        // Predicated region
        $region33: #{tpu_custom_call.1} parent=11 // pred_check
          %p269 = pneg %p171
        $region34: #{tpu_custom_call.1} parent=11 // pred_check_branch
          %271 = sbr.rel (%p269) target = $region36
        $region35: #{tpu_custom_call.1} parent=11 // pred_region
          _
        $region36: #{tpu_custom_call.1} parent=11 // pred_fallthru
          _
        // Predicated region
        $region37: #{tpu_custom_call.1} parent=11 // pred_check
          %p272 = pneg %p192
        $region38: #{tpu_custom_call.1} parent=11 // pred_check_branch
          %274 = sbr.rel (%p272) target = $region40
        $region39: #{tpu_custom_call.1} parent=11 // pred_region
          %s276 = ssub.s32 1024, 1024
          %277 = vsyncadd [#allocation3], %s276
          %s278 = sshll.u32 [#allocation2], 4
          %s279 = int_to_ptr.vmem [resolvable:$true] %s278
          %284 = dma.hbm_to_vmem [thread:$0]  %s7, 1024, %s279, [#allocation3], 64, 64, 4
        $region40: #{tpu_custom_call.1} parent=11 // pred_fallthru
          _
        // Predicated region
        $region41: #{tpu_custom_call.1} parent=11 // pred_check
          %p285 = pneg %p213
        $region42: #{tpu_custom_call.1} parent=11 // pred_check_branch
          %287 = sbr.rel (%p285) target = $region44
        $region43: #{tpu_custom_call.1} parent=11 // pred_region
          _
        $region44: #{tpu_custom_call.1} parent=11 // pred_fallthru
          _
      $region12: #{tpu_custom_call.1} parent=5 // pred_fallthru
        _
      %p288 = scmp.lt.s32.totalorder %s19, 4
      // Predicated region
      $region45: #{tpu_custom_call.1} parent=5 // pred_check
        %p289 = pneg %p288
      $region46: #{tpu_custom_call.1} parent=5 // pred_check_branch
        %291 = sbr.rel (%p289) target = $region48
      $region47: #{tpu_custom_call.1} parent=5 // pred_region
        // Predicated region
        $region49: #{tpu_custom_call.1} parent=47 // pred_check
          %p292 = pneg %p39
        $region50: #{tpu_custom_call.1} parent=47 // pred_check_branch
          %294 = sbr.rel (%p292) target = $region52
        $region51: #{tpu_custom_call.1} parent=47 // pred_region
          %s295 = smul.u32 8, %s19
          %p296 = scmp.lt.s32.totalorder %s295, 31
          %s297 = scalar_select %p296, %s295, 31
          %s298 = smul.addr %s297, 4
          %s299 = scalar_lea.vmem %s0, %s298
          %s300 = smul.u32 8, %s19
        $region52: #{tpu_custom_call.1} parent=47 // pred_fallthru
          _
      $region48: #{tpu_custom_call.1} parent=5 // pred_fallthru
        _
      %p301 = scmp.le.s32.totalorder 1, %s19
      %p302 = scmp.lt.s32.totalorder %s19, 5
      %p303 = pnand %p301, %p302
      %p304 = pneg %p303
      // Predicated region
      $region53: #{tpu_custom_call.1} parent=5 // pred_check
        _
      $region54: #{tpu_custom_call.1} parent=5 // pred_check_branch
        %306 = sbr.rel (%p303) target = $region56
      $region55: #{tpu_custom_call.1} parent=5 // pred_region
        %s307 = ssub.s32 %s19, 1
        // Predicated region
        $region57: #{tpu_custom_call.1} parent=55 // pred_check
          %p308 = pneg %p192
        $region58: #{tpu_custom_call.1} parent=55 // pred_check_branch
          %310 = sbr.rel (%p308) target = $region60
        $region59: #{tpu_custom_call.1} parent=55 // pred_region
          %311 = dma.done [#allocation3], 1024
        $region60: #{tpu_custom_call.1} parent=55 // pred_fallthru
          _
        %s312 = smul.u32 8, %s24
        %p313 = scmp.lt.s32.totalorder %s312, 31
        %s314 = scalar_select %p313, %s312, 31
        %s315 = smul.addr %s314, 4
        %s316 = scalar_lea.vmem %s0, %s315
        %p317 = pneg %p45
        %p318 = pneg %p42
        %p319 = pneg %p66
        %p320 = pneg %p63
        %p321 = pneg %p87
        %p322 = pneg %p84
        %p323 = pneg %p108
        %p324 = pneg %p105
        %p325 = pneg %p129
        %p326 = pneg %p126
        %p327 = pneg %p150
        %p328 = pneg %p147
        %p329 = pneg %p171
        %p330 = pneg %p168
        %p331 = pneg %p192
        %p332 = pneg %p189
        %p333 = pneg %p213
        %p334 = pneg %p210
        %p335 = pneg %p239
        %p336 = pneg %p236
        %s337 = sand.u32 %s226, 1
        %s338 = scalar_lea.sflag [#allocation4], %s337
        %s339 = sand.u32 %s226, 1
        %s340 = smul.addr %s339, 64
        %s341 = scalar_lea.vmem [#allocation5], %s340
        %s342 = smul.u32 8, %s24
        %p343 = scmp.lt.s32.totalorder %s342, 31
        %s344 = scalar_select %p343, %s342, 31
        %s345 = smul.addr %s344, 4
        %s346 = scalar_lea.vmem %s0, %s345
        %s347 = smul.u32 8, %s24
        %s348 = smul.u32 8, %s24
        %v350 = vld [vmem:[%s346] sm:$0xf]
        %v351 = vld [vmem:[%s346 + $0x4] sm:$0xf]
        %v352 = vld [vmem:[%s346 + $0x8] sm:$0xf]
        %v353 = vld [vmem:[%s346 + $0xc] sm:$0xf]
        %v354 = vld [vmem:[%s346 + $0x10] sm:$0xf]
        %v355 = vld [vmem:[%s346 + $0x14] sm:$0xf]
        %v356 = vld [vmem:[%s346 + $0x18] sm:$0xf]
        %v357 = vld [vmem:[%s346 + $0x1c] sm:$0xf]
        %v358 = vld [vmem:[%s1] sm:$0xf]
        %v359 = vld [vmem:[%s1 + $0x4] sm:$0xf]
        %v360 = vld [vmem:[%s2] sm:$0x1]
        %v362 = vlaneseq
        %v363 = vshrl.u32 %v362, 7
        %v364 = vsub.s32 0, %v363
        %v365 = vrot.slane %v360, %v364
        %v375 = vunpack.c.l.b16 %v350
        %v376 = vunpack.c.l.b16 %v351
        %v377 = vunpack.c.l.b16 %v352
        %v378 = vunpack.c.l.b16 %v353
        %v379 = vunpack.c.l.b16 %v354
        %v380 = vunpack.c.l.b16 %v355
        %v381 = vunpack.c.l.b16 %v356
        %v382 = vunpack.c.l.b16 %v357
        %v383 = vpack.c.b16 %v376, %v375
        %v384 = vpack.c.b16 %v378, %v377
        %v385 = vpack.c.b16 %v380, %v379
        %v386 = vpack.c.b16 %v382, %v381
        %v389 = vunpack.c.l.b16 %v358
        %v390 = vunpack.c.l.b16 %v359
        %v391 = vpack.c.b16 %v390, %v389
        %vm393 = vcmask 130048
        %v395 = vsel %vm393, %v383, 0
        %v398 = vsel %vm393, %v384, 0
        %v401 = vsel %vm393, %v385, 0
        %v404 = vsel %vm393, %v386, 0
        %406 = vmatprep.subr.bf16.mxu0 0
        %407 = vmatpush1.bf16.msra.mxu0 %v391
        %408 = vmatprep.subr.bf16.mxu0 0
        %409 = vmatpush1.bf16.msra.mxu0 0
        %410 = vmatprep.subr.bf16.mxu0 0
        %411 = vmatpush1.bf16.msra.mxu0 0
        %412 = vmatprep.subr.bf16.mxu0 0
        %413 = vmatpush1.bf16.msra.mxu0 0
        %414 = vmatprep.subr.bf16.mxu0 0
        %415 = vmatpush1.bf16.msra.mxu0 0
        %416 = vmatprep.subr.bf16.mxu0 0
        %417 = vmatpush1.bf16.msra.mxu0 0
        %418 = vmatprep.subr.bf16.mxu0 0
        %419 = vmatpush1.bf16.msra.mxu0 0
        %420 = vmatprep.subr.bf16.mxu0 0
        %421 = vmatpush1.bf16.msra.mxu0 0
        %422 = vmatprep.subr.bf16.mxu0 0
        %423 = vmatpush1.bf16.msra.mxu0 0
        %424 = vmatprep.subr.bf16.mxu0 0
        %425 = vmatpush1.bf16.msra.mxu0 0
        %426 = vmatprep.subr.bf16.mxu0 0
        %427 = vmatpush1.bf16.msra.mxu0 0
        %428 = vmatprep.subr.bf16.mxu0 0
        %429 = vmatpush1.bf16.msra.mxu0 0
        %430 = vmatprep.subr.bf16.mxu0 0
        %431 = vmatpush1.bf16.msra.mxu0 0
        %432 = vmatprep.subr.bf16.mxu0 0
        %433 = vmatpush1.bf16.msra.mxu0 0
        %434 = vmatprep.subr.bf16.mxu0 0
        %435 = vmatpush1.bf16.msra.mxu0 0
        %436 = vmatprep.subr.bf16.mxu0 0
        %437 = vmatpush1.bf16.msra.mxu0 0
        %438 = vmatprep.mubr.bf16.mxu0 0
        %439 = vmatmul.mubr.bf16.gmra.mrb[0].mxu0 %v395
        %v440 = vpop.f32.mrb[0].mxu0
        %v441 = vadd.f32 %v365, %v440
        %v442 = vpop.f32.mrb[0].mxu0
        %v443 = vpop.f32.mrb[0].mxu0
        %v444 = vadd.f32 %v365, %v443
        %v445 = vpop.f32.mrb[0].mxu0
        %446 = vmatprep.mubr.bf16.mxu0 0
        %447 = vmatmul.mubr.bf16.gmra.mrb[0].mxu0 %v398
        %v448 = vpop.f32.mrb[0].mxu0
        %v449 = vadd.f32 %v365, %v448
        %v450 = vpop.f32.mrb[0].mxu0
        %v451 = vpop.f32.mrb[0].mxu0
        %v452 = vadd.f32 %v365, %v451
        %v453 = vpop.f32.mrb[0].mxu0
        %454 = vmatprep.mubr.bf16.mxu0 0
        %455 = vmatmul.mubr.bf16.gmra.mrb[0].mxu0 %v401
        %v456 = vpop.f32.mrb[0].mxu0
        %v457 = vadd.f32 %v365, %v456
        %v458 = vpop.f32.mrb[0].mxu0
        %v459 = vpop.f32.mrb[0].mxu0
        %v460 = vadd.f32 %v365, %v459
        %v461 = vpop.f32.mrb[0].mxu0
        %462 = vmatprep.mubr.bf16.mxu0 0
        %463 = vmatmul.mubr.bf16.gmra.mrb[0].mxu0 %v404
        %v464 = vpop.f32.mrb[0].mxu0
        %v465 = vadd.f32 %v365, %v464
        %v466 = vpop.f32.mrb[0].mxu0
        %v467 = vpop.f32.mrb[0].mxu0
        %v468 = vadd.f32 %v365, %v467
        %v469 = vpop.f32.mrb[0].mxu0
        %470 = vdwg.mxu0
        %v471 = vmax.f32 %v441, 0.0
        %v472 = vmax.f32 %v444, 0.0
        %v473 = vmax.f32 %v449, 0.0
        %v474 = vmax.f32 %v452, 0.0
        %v475 = vmax.f32 %v457, 0.0
        %v476 = vmax.f32 %v460, 0.0
        %v477 = vmax.f32 %v465, 0.0
        %v478 = vmax.f32 %v468, 0.0
        %v479 = vpack.c.bf16 %v472, %v471
        %v480 = vpack.c.bf16 %v474, %v473
        %v481 = vpack.c.bf16 %v476, %v475
        %v482 = vpack.c.bf16 %v478, %v477
        %v483 = vld [vmem:[%s3] sm:$0xf]
        %v484 = vld [vmem:[%s3 + $0x4] sm:$0xf]
        %v485 = vld [vmem:[%s3 + $0x8] sm:$0xf]
        %v486 = vld [vmem:[%s3 + $0xc] sm:$0xf]
        %v487 = vld [vmem:[%s3 + $0x10] sm:$0xf]
        %v488 = vld [vmem:[%s3 + $0x14] sm:$0xf]
        %v489 = vld [vmem:[%s3 + $0x18] sm:$0xf]
        %v490 = vld [vmem:[%s3 + $0x1c] sm:$0xf]
        %v491 = vld [vmem:[%s3 + $0x20] sm:$0xf]
        %v492 = vld [vmem:[%s3 + $0x24] sm:$0xf]
        %v493 = vld [vmem:[%s3 + $0x28] sm:$0xf]
        %v494 = vld [vmem:[%s3 + $0x2c] sm:$0xf]
        %v495 = vld [vmem:[%s3 + $0x30] sm:$0xf]
        %v496 = vld [vmem:[%s3 + $0x34] sm:$0xf]
        %v497 = vld [vmem:[%s3 + $0x38] sm:$0xf]
        %v498 = vld [vmem:[%s3 + $0x3c] sm:$0xf]
        %v499 = vld [vmem:[%s4] sm:$0x1]
        %v501 = vlaneseq
        %v502 = vshrl.u32 %v501, 7
        %v503 = vsub.s32 0, %v502
        %v504 = vrot.slane %v499, %v503
        %v522 = vunpack.c.l.b16 %v483
        %v523 = vunpack.c.l.b16 %v484
        %v524 = vunpack.c.l.b16 %v485
        %v525 = vunpack.c.l.b16 %v486
        %v526 = vunpack.c.l.b16 %v487
        %v527 = vunpack.c.l.b16 %v488
        %v528 = vunpack.c.l.b16 %v489
        %v529 = vunpack.c.l.b16 %v490
        %v530 = vunpack.c.l.b16 %v491
        %v531 = vunpack.c.l.b16 %v492
        %v532 = vunpack.c.l.b16 %v493
        %v533 = vunpack.c.l.b16 %v494
        %v534 = vunpack.c.l.b16 %v495
        %v535 = vunpack.c.l.b16 %v496
        %v536 = vunpack.c.l.b16 %v497
        %v537 = vunpack.c.l.b16 %v498
        %v538 = vpack.c.b16 %v523, %v522
        %v539 = vpack.c.b16 %v525, %v524
        %v540 = vpack.c.b16 %v527, %v526
        %v541 = vpack.c.b16 %v529, %v528
        %v542 = vpack.c.b16 %v531, %v530
        %v543 = vpack.c.b16 %v533, %v532
        %v544 = vpack.c.b16 %v535, %v534
        %v545 = vpack.c.b16 %v537, %v536
        %554 = vmatprep.subr.bf16.mxu0 0
        %555 = vmatpush1.bf16.msra.mxu0 %v538
        %556 = vmatprep.subr.bf16.mxu0 0
        %557 = vmatpush1.bf16.msra.mxu0 %v539
        %558 = vmatprep.subr.bf16.mxu0 0
        %559 = vmatpush1.bf16.msra.mxu0 %v540
        %560 = vmatprep.subr.bf16.mxu0 0
        %561 = vmatpush1.bf16.msra.mxu0 %v541
        %562 = vmatprep.subr.bf16.mxu0 0
        %563 = vmatpush1.bf16.msra.mxu0 %v542
        %564 = vmatprep.subr.bf16.mxu0 0
        %565 = vmatpush1.bf16.msra.mxu0 %v543
        %566 = vmatprep.subr.bf16.mxu0 0
        %567 = vmatpush1.bf16.msra.mxu0 %v544
        %568 = vmatprep.subr.bf16.mxu0 0
        %569 = vmatpush1.bf16.msra.mxu0 %v545
        %570 = vmatprep.subr.bf16.mxu0 0
        %571 = vmatpush1.bf16.msra.mxu0 0
        %572 = vmatprep.subr.bf16.mxu0 0
        %573 = vmatpush1.bf16.msra.mxu0 0
        %574 = vmatprep.subr.bf16.mxu0 0
        %575 = vmatpush1.bf16.msra.mxu0 0
        %576 = vmatprep.subr.bf16.mxu0 0
        %577 = vmatpush1.bf16.msra.mxu0 0
        %578 = vmatprep.subr.bf16.mxu0 0
        %579 = vmatpush1.bf16.msra.mxu0 0
        %580 = vmatprep.subr.bf16.mxu0 0
        %581 = vmatpush1.bf16.msra.mxu0 0
        %582 = vmatprep.subr.bf16.mxu0 0
        %583 = vmatpush1.bf16.msra.mxu0 0
        %584 = vmatprep.subr.bf16.mxu0 0
        %585 = vmatpush1.bf16.msra.mxu0 0
        %586 = vmatprep.mubr.bf16.mxu0 0
        %587 = vmatmul.mubr.bf16.gmra.mrb[0].mxu0 %v479
        %v588 = vpop.f32.mrb[0].mxu0
        %v589 = vadd.f32 %v504, %v588
        %v590 = vpop.f32.mrb[0].mxu0
        %v591 = vpop.f32.mrb[0].mxu0
        %v592 = vadd.f32 %v504, %v591
        %v593 = vpop.f32.mrb[0].mxu0
        %594 = vmatprep.mubr.bf16.mxu0 0
        %595 = vmatmul.mubr.bf16.gmra.mrb[0].mxu0 %v480
        %v596 = vpop.f32.mrb[0].mxu0
        %v597 = vadd.f32 %v504, %v596
        %v598 = vpop.f32.mrb[0].mxu0
        %v599 = vpop.f32.mrb[0].mxu0
        %v600 = vadd.f32 %v504, %v599
        %v601 = vpop.f32.mrb[0].mxu0
        %602 = vmatprep.mubr.bf16.mxu0 0
        %603 = vmatmul.mubr.bf16.gmra.mrb[0].mxu0 %v481
        %v604 = vpop.f32.mrb[0].mxu0
        %v605 = vadd.f32 %v504, %v604
        %v606 = vpop.f32.mrb[0].mxu0
        %v607 = vpop.f32.mrb[0].mxu0
        %v608 = vadd.f32 %v504, %v607
        %v609 = vpop.f32.mrb[0].mxu0
        %610 = vmatprep.mubr.bf16.mxu0 0
        %611 = vmatmul.mubr.bf16.gmra.mrb[0].mxu0 %v482
        %v612 = vpop.f32.mrb[0].mxu0
        %v613 = vadd.f32 %v504, %v612
        %v614 = vpop.f32.mrb[0].mxu0
        %v615 = vpop.f32.mrb[0].mxu0
        %v616 = vadd.f32 %v504, %v615
        %v617 = vpop.f32.mrb[0].mxu0
        %618 = vdwg.mxu0
        %v619 = vmax.f32 %v589, 0.0
        %v620 = vmax.f32 %v592, 0.0
        %v621 = vmax.f32 %v597, 0.0
        %v622 = vmax.f32 %v600, 0.0
        %v623 = vmax.f32 %v605, 0.0
        %v624 = vmax.f32 %v608, 0.0
        %v625 = vmax.f32 %v613, 0.0
        %v626 = vmax.f32 %v616, 0.0
        %v627 = vpack.c.bf16 %v620, %v619
        %v628 = vpack.c.bf16 %v622, %v621
        %v629 = vpack.c.bf16 %v624, %v623
        %v630 = vpack.c.bf16 %v626, %v625
        %v631 = vld [vmem:[%s5] sm:$0xf]
        %v632 = vld [vmem:[%s5 + $0x4] sm:$0xf]
        %v633 = vld [vmem:[%s5 + $0x8] sm:$0xf]
        %v634 = vld [vmem:[%s5 + $0xc] sm:$0xf]
        %v635 = vld [vmem:[%s5 + $0x10] sm:$0xf]
        %v636 = vld [vmem:[%s5 + $0x14] sm:$0xf]
        %v637 = vld [vmem:[%s5 + $0x18] sm:$0xf]
        %v638 = vld [vmem:[%s5 + $0x1c] sm:$0xf]
        %v639 = vld [vmem:[%s5 + $0x20] sm:$0xf]
        %v640 = vld [vmem:[%s5 + $0x24] sm:$0xf]
        %v641 = vld [vmem:[%s5 + $0x28] sm:$0xf]
        %v642 = vld [vmem:[%s5 + $0x2c] sm:$0xf]
        %v643 = vld [vmem:[%s5 + $0x30] sm:$0xf]
        %v644 = vld [vmem:[%s5 + $0x34] sm:$0xf]
        %v645 = vld [vmem:[%s5 + $0x38] sm:$0xf]
        %v646 = vld [vmem:[%s5 + $0x3c] sm:$0xf]
        %v647 = vld [vmem:[%s6] sm:$0x1]
        %v649 = vlaneseq
        %v650 = vshrl.u32 %v649, 7
        %v651 = vsub.s32 0, %v650
        %v652 = vrot.slane %v647, %v651
        %v670 = vunpack.c.l.b16 %v631
        %v671 = vunpack.c.l.b16 %v632
        %v672 = vunpack.c.l.b16 %v633
        %v673 = vunpack.c.l.b16 %v634
        %v674 = vunpack.c.l.b16 %v635
        %v675 = vunpack.c.l.b16 %v636
        %v676 = vunpack.c.l.b16 %v637
        %v677 = vunpack.c.l.b16 %v638
        %v678 = vunpack.c.l.b16 %v639
        %v679 = vunpack.c.l.b16 %v640
        %v680 = vunpack.c.l.b16 %v641
        %v681 = vunpack.c.l.b16 %v642
        %v682 = vunpack.c.l.b16 %v643
        %v683 = vunpack.c.l.b16 %v644
        %v684 = vunpack.c.l.b16 %v645
        %v685 = vunpack.c.l.b16 %v646
        %v686 = vpack.c.b16 %v671, %v670
        %v687 = vpack.c.b16 %v673, %v672
        %v688 = vpack.c.b16 %v675, %v674
        %v689 = vpack.c.b16 %v677, %v676
        %v690 = vpack.c.b16 %v679, %v678
        %v691 = vpack.c.b16 %v681, %v680
        %v692 = vpack.c.b16 %v683, %v682
        %v693 = vpack.c.b16 %v685, %v684
        %702 = vmatprep.subr.bf16.mxu0 0
        %703 = vmatpush1.bf16.msra.mxu0 %v686
        %704 = vmatprep.subr.bf16.mxu0 0
        %705 = vmatpush1.bf16.msra.mxu0 %v687
        %706 = vmatprep.subr.bf16.mxu0 0
        %707 = vmatpush1.bf16.msra.mxu0 %v688
        %708 = vmatprep.subr.bf16.mxu0 0
        %709 = vmatpush1.bf16.msra.mxu0 %v689
        %710 = vmatprep.subr.bf16.mxu0 0
        %711 = vmatpush1.bf16.msra.mxu0 %v690
        %712 = vmatprep.subr.bf16.mxu0 0
        %713 = vmatpush1.bf16.msra.mxu0 %v691
        %714 = vmatprep.subr.bf16.mxu0 0
        %715 = vmatpush1.bf16.msra.mxu0 %v692
        %716 = vmatprep.subr.bf16.mxu0 0
        %717 = vmatpush1.bf16.msra.mxu0 %v693
        %718 = vmatprep.subr.bf16.mxu0 0
        %719 = vmatpush1.bf16.msra.mxu0 0
        %720 = vmatprep.subr.bf16.mxu0 0
        %721 = vmatpush1.bf16.msra.mxu0 0
        %722 = vmatprep.subr.bf16.mxu0 0
        %723 = vmatpush1.bf16.msra.mxu0 0
        %724 = vmatprep.subr.bf16.mxu0 0
        %725 = vmatpush1.bf16.msra.mxu0 0
        %726 = vmatprep.subr.bf16.mxu0 0
        %727 = vmatpush1.bf16.msra.mxu0 0
        %728 = vmatprep.subr.bf16.mxu0 0
        %729 = vmatpush1.bf16.msra.mxu0 0
        %730 = vmatprep.subr.bf16.mxu0 0
        %731 = vmatpush1.bf16.msra.mxu0 0
        %732 = vmatprep.subr.bf16.mxu0 0
        %733 = vmatpush1.bf16.msra.mxu0 0
        %734 = vmatprep.mubr.bf16.mxu0 0
        %735 = vmatmul.mubr.bf16.gmra.mrb[0].mxu0 %v627
        %v736 = vpop.f32.mrb[0].mxu0
        %v737 = vadd.f32 %v652, %v736
        %v738 = vpop.f32.mrb[0].mxu0
        %v739 = vpop.f32.mrb[0].mxu0
        %v740 = vadd.f32 %v652, %v739
        %v741 = vpop.f32.mrb[0].mxu0
        %742 = vmatprep.mubr.bf16.mxu0 0
        %743 = vmatmul.mubr.bf16.gmra.mrb[0].mxu0 %v628
        %v744 = vpop.f32.mrb[0].mxu0
        %v745 = vadd.f32 %v652, %v744
        %v746 = vpop.f32.mrb[0].mxu0
        %v747 = vpop.f32.mrb[0].mxu0
        %v748 = vadd.f32 %v652, %v747
        %v749 = vpop.f32.mrb[0].mxu0
        %750 = vmatprep.mubr.bf16.mxu0 0
        %751 = vmatmul.mubr.bf16.gmra.mrb[0].mxu0 %v629
        %v752 = vpop.f32.mrb[0].mxu0
        %v753 = vadd.f32 %v652, %v752
        %v754 = vpop.f32.mrb[0].mxu0
        %v755 = vpop.f32.mrb[0].mxu0
        %v756 = vadd.f32 %v652, %v755
        %v757 = vpop.f32.mrb[0].mxu0
        %758 = vmatprep.mubr.bf16.mxu0 0
        %759 = vmatmul.mubr.bf16.gmra.mrb[0].mxu0 %v630
        %v760 = vpop.f32.mrb[0].mxu0
        %v761 = vadd.f32 %v652, %v760
        %v762 = vpop.f32.mrb[0].mxu0
        %v763 = vpop.f32.mrb[0].mxu0
        %v764 = vadd.f32 %v652, %v763
        %v765 = vpop.f32.mrb[0].mxu0
        %766 = vdwg.mxu0
        %v767 = vmax.f32 %v737, 0.0
        %v768 = vmax.f32 %v740, 0.0
        %v769 = vmax.f32 %v745, 0.0
        %v770 = vmax.f32 %v748, 0.0
        %v771 = vmax.f32 %v753, 0.0
        %v772 = vmax.f32 %v756, 0.0
        %v773 = vmax.f32 %v761, 0.0
        %v774 = vmax.f32 %v764, 0.0
        %v775 = vpack.c.bf16 %v768, %v767
        %v776 = vpack.c.bf16 %v770, %v769
        %v777 = vpack.c.bf16 %v772, %v771
        %v778 = vpack.c.bf16 %v774, %v773
        %v779 = vld [vmem:[#allocation2] sm:$0xf]
        %v780 = vld [vmem:[#allocation2 + $0x4] sm:$0xf]
        %v781 = vld [vmem:[#allocation2 + $0x8] sm:$0xf]
        %v782 = vld [vmem:[#allocation2 + $0xc] sm:$0xf]
        %v783 = vld [vmem:[#allocation2 + $0x10] sm:$0xf]
        %v784 = vld [vmem:[#allocation2 + $0x14] sm:$0xf]
        %v785 = vld [vmem:[#allocation2 + $0x18] sm:$0xf]
        %v786 = vld [vmem:[#allocation2 + $0x1c] sm:$0xf]
        %v787 = vld [vmem:[#allocation2 + $0x20] sm:$0xf]
        %v788 = vld [vmem:[#allocation2 + $0x24] sm:$0xf]
        %v789 = vld [vmem:[#allocation2 + $0x28] sm:$0xf]
        %v790 = vld [vmem:[#allocation2 + $0x2c] sm:$0xf]
        %v791 = vld [vmem:[#allocation2 + $0x30] sm:$0xf]
        %v792 = vld [vmem:[#allocation2 + $0x34] sm:$0xf]
        %v793 = vld [vmem:[#allocation2 + $0x38] sm:$0xf]
        %v794 = vld [vmem:[#allocation2 + $0x3c] sm:$0xf]
        %v795 = vld [vmem:[%s8] sm:$0x1]
        %v797 = vlaneseq
        %v798 = vshrl.u32 %v797, 7
        %v799 = vsub.s32 0, %v798
        %v800 = vrot.slane %v795, %v799
        %v818 = vunpack.c.l.b16 %v779
        %v819 = vunpack.c.l.b16 %v780
        %v820 = vunpack.c.l.b16 %v781
        %v821 = vunpack.c.l.b16 %v782
        %v822 = vunpack.c.l.b16 %v783
        %v823 = vunpack.c.l.b16 %v784
        %v824 = vunpack.c.l.b16 %v785
        %v825 = vunpack.c.l.b16 %v786
        %v826 = vunpack.c.l.b16 %v787
        %v827 = vunpack.c.l.b16 %v788
        %v828 = vunpack.c.l.b16 %v789
        %v829 = vunpack.c.l.b16 %v790
        %v830 = vunpack.c.l.b16 %v791
        %v831 = vunpack.c.l.b16 %v792
        %v832 = vunpack.c.l.b16 %v793
        %v833 = vunpack.c.l.b16 %v794
        %v834 = vpack.c.b16 %v819, %v818
        %v835 = vpack.c.b16 %v821, %v820
        %v836 = vpack.c.b16 %v823, %v822
        %v837 = vpack.c.b16 %v825, %v824
        %v838 = vpack.c.b16 %v827, %v826
        %v839 = vpack.c.b16 %v829, %v828
        %v840 = vpack.c.b16 %v831, %v830
        %v841 = vpack.c.b16 %v833, %v832
        %850 = vmatprep.subr.bf16.mxu0 0
        %851 = vmatpush1.bf16.msra.mxu0 %v834
        %852 = vmatprep.subr.bf16.mxu0 0
        %853 = vmatpush1.bf16.msra.mxu0 %v835
        %854 = vmatprep.subr.bf16.mxu0 0
        %855 = vmatpush1.bf16.msra.mxu0 %v836
        %856 = vmatprep.subr.bf16.mxu0 0
        %857 = vmatpush1.bf16.msra.mxu0 %v837
        %858 = vmatprep.subr.bf16.mxu0 0
        %859 = vmatpush1.bf16.msra.mxu0 %v838
        %860 = vmatprep.subr.bf16.mxu0 0
        %861 = vmatpush1.bf16.msra.mxu0 %v839
        %862 = vmatprep.subr.bf16.mxu0 0
        %863 = vmatpush1.bf16.msra.mxu0 %v840
        %864 = vmatprep.subr.bf16.mxu0 0
        %865 = vmatpush1.bf16.msra.mxu0 %v841
        %866 = vmatprep.subr.bf16.mxu0 0
        %867 = vmatpush1.bf16.msra.mxu0 0
        %868 = vmatprep.subr.bf16.mxu0 0
        %869 = vmatpush1.bf16.msra.mxu0 0
        %870 = vmatprep.subr.bf16.mxu0 0
        %871 = vmatpush1.bf16.msra.mxu0 0
        %872 = vmatprep.subr.bf16.mxu0 0
        %873 = vmatpush1.bf16.msra.mxu0 0
        %874 = vmatprep.subr.bf16.mxu0 0
        %875 = vmatpush1.bf16.msra.mxu0 0
        %876 = vmatprep.subr.bf16.mxu0 0
        %877 = vmatpush1.bf16.msra.mxu0 0
        %878 = vmatprep.subr.bf16.mxu0 0
        %879 = vmatpush1.bf16.msra.mxu0 0
        %880 = vmatprep.subr.bf16.mxu0 0
        %881 = vmatpush1.bf16.msra.mxu0 0
        %882 = vmatprep.mubr.bf16.mxu0 0
        %883 = vmatmul.mubr.bf16.gmra.mrb[0].mxu0 %v775
        %v884 = vpop.f32.mrb[0].mxu0
        %v885 = vadd.f32 %v800, %v884
        %v886 = vpop.f32.mrb[0].mxu0
        %v887 = vpop.f32.mrb[0].mxu0
        %v888 = vadd.f32 %v800, %v887
        %v889 = vpop.f32.mrb[0].mxu0
        %890 = vmatprep.mubr.bf16.mxu0 0
        %891 = vmatmul.mubr.bf16.gmra.mrb[0].mxu0 %v776
        %v892 = vpop.f32.mrb[0].mxu0
        %v893 = vadd.f32 %v800, %v892
        %v894 = vpop.f32.mrb[0].mxu0
        %v895 = vpop.f32.mrb[0].mxu0
        %v896 = vadd.f32 %v800, %v895
        %v897 = vpop.f32.mrb[0].mxu0
        %898 = vmatprep.mubr.bf16.mxu0 0
        %899 = vmatmul.mubr.bf16.gmra.mrb[0].mxu0 %v777
        %v900 = vpop.f32.mrb[0].mxu0
        %v901 = vadd.f32 %v800, %v900
        %v902 = vpop.f32.mrb[0].mxu0
        %v903 = vpop.f32.mrb[0].mxu0
        %v904 = vadd.f32 %v800, %v903
        %v905 = vpop.f32.mrb[0].mxu0
        %906 = vmatprep.mubr.bf16.mxu0 0
        %907 = vmatmul.mubr.bf16.gmra.mrb[0].mxu0 %v778
        %v908 = vpop.f32.mrb[0].mxu0
        %v909 = vadd.f32 %v800, %v908
        %v910 = vpop.f32.mrb[0].mxu0
        %v911 = vpop.f32.mrb[0].mxu0
        %v912 = vadd.f32 %v800, %v911
        %v913 = vpop.f32.mrb[0].mxu0
        %914 = vdwg.mxu0
        %915 = vst [vmem:[%s341] sm:$0xff] %v885
        %916 = vst [vmem:[%s341 + $0x8] sm:$0xff] %v888
        %917 = vst [vmem:[%s341 + $0x10] sm:$0xff] %v893
        %918 = vst [vmem:[%s341 + $0x18] sm:$0xff] %v896
        %919 = vst [vmem:[%s341 + $0x20] sm:$0xff] %v901
        %920 = vst [vmem:[%s341 + $0x28] sm:$0xff] %v904
        %921 = vst [vmem:[%s341 + $0x30] sm:$0xff] %v909
        %922 = vst [vmem:[%s341 + $0x38] sm:$0xff] %v912
        %s923 = sand.u32 %s226, 1
        %s924 = scalar_lea.sflag [#allocation4], %s923
        %s925 = sand.u32 %s226, 1
        %s926 = smul.addr %s925, 64
        %s927 = scalar_lea.vmem [#allocation5], %s926
        // Predicated region
        $region61: #{tpu_custom_call.1} parent=55 // pred_check
          %p928 = pneg %p236
        $region62: #{tpu_custom_call.1} parent=55 // pred_check_branch
          %930 = sbr.rel (%p928) target = $region64
        $region63: #{tpu_custom_call.1} parent=55 // pred_region
          %s931 = smul.u32 8, %s24
          %s933 = ssub.s32 1024, 1024
          %934 = vsyncadd %s924, %s933
          %s935 = smul.addr %s931, 128
          %s936 = scalar_lea.hbm %s9, %s935
          %s937 = sshll.u32 %s927, 4
          %s938 = int_to_ptr.vmem [resolvable:$true] %s937
          %943 = dma.vmem_to_hbm [thread:$0]  %s938, 1024, %s936, %s924, 128, 128, 8
        $region64: #{tpu_custom_call.1} parent=55 // pred_fallthru
          _
      $region56: #{tpu_custom_call.1} parent=5 // pred_fallthru
        _
      %p944 = scmp.le.s32.totalorder 2, %s19
      // Predicated region
      $region65: #{tpu_custom_call.1} parent=5 // pred_check
        %p945 = pneg %p944
      $region66: #{tpu_custom_call.1} parent=5 // pred_check_branch
        %947 = sbr.rel (%p945) target = $region68
      $region67: #{tpu_custom_call.1} parent=5 // pred_region
        %s948 = ssub.s32 %s19, 2
        // Predicated region
        $region69: #{tpu_custom_call.1} parent=67 // pred_check
          %p949 = pneg %p242
        $region70: #{tpu_custom_call.1} parent=67 // pred_check_branch
          %951 = sbr.rel (%p949) target = $region72
        $region71: #{tpu_custom_call.1} parent=67 // pred_region
          %s952 = sand.u32 %s227, 1
          %s953 = scalar_lea.sflag [#allocation4], %s952
          %s954 = sand.u32 %s227, 1
          %s955 = smul.addr %s954, 64
          %s956 = scalar_lea.vmem [#allocation5], %s955
          %957 = dma.done %s953, 1024
        $region72: #{tpu_custom_call.1} parent=67 // pred_fallthru
          _
      $region68: #{tpu_custom_call.1} parent=5 // pred_fallthru
        _
    $region6: #{tpu_custom_call.1} parent=1 // loop_footer
      %s23 = sadd.s32 1, %s19
    $region7: #{tpu_custom_call.1} parent=1 // loop_footer_branch
      %18 = sbr.rel target = $region3
    $region8: #{tpu_custom_call.1} parent=1 // loop_exit
      _
    %958 = vsyncpa [#allocation3], 1
    %s959 = scalar_lea.sflag [#allocation3], 1
    %960 = vsyncpa %s959, 1
    %961 = vsyncpa [#allocation4], 1
    %s962 = scalar_lea.sflag [#allocation4], 1
    %963 = vsyncpa %s962, 1

</llo_original>
